<compile_context>
chip_gen: v6e
topology: v6e:2x2x1
jax: 0.10.0
libtpu: 0.0.40
codegen_flags: <defaults>
</compile_context>

<pallas_src>
import functools

import jax
import jax.numpy as jnp
from jax.experimental import pallas as pl
from jax.experimental.pallas import tpu as pltpu


_LANE = 128
_MAX_COLS = 4096  # lane-dense width cap


def _vmem_capacity_bytes() -> int:
    """Best-effort VMEM capacity query; conservative fallback (v7x per-TC)."""
    try:
        info = pltpu.get_tpu_info()
        cap = getattr(info, "vmem_capacity_bytes", None)
        if cap:
            return int(cap)
    except Exception:
        pass
    return 64 << 20


_VMEM_BYTES = _vmem_capacity_bytes()
# ~VMEM/10 per buffer, capped at 8 MiB, floored at 1 MiB:
#   v5e/v6e (128 MiB VMEM) -> 8 MiB tiles; v7x (64 MiB/TC) -> ~6.4 MiB tiles.
_TARGET_TILE_BYTES = max(1 << 20, min(8 << 20, _VMEM_BYTES // 10))
# Explicit scoped-VMEM limit: covers double-buffered in+out tiles + headroom,
# stays below physical VMEM on every generation.
_VMEM_LIMIT_BYTES = int(min(_VMEM_BYTES, 6 * _TARGET_TILE_BYTES + (8 << 20)))


def _copy_kernel(x_ref, o_ref):
    # Elementwise identity on the current VMEM tile.
    o_ref[...] = x_ref[...]


def _lane_dense_shape(total: int) -> tuple[int, int]:
    """Factor (padded) element count into (rows, cols) with cols % 128 == 0."""
    padded = ((total + _LANE - 1) // _LANE) * _LANE
    cols = _LANE
    for c in range(min(_MAX_COLS, padded), _LANE - 1, -_LANE):
        if padded % c == 0:
            cols = c
            break
    return padded // cols, cols


def _sublane_pack(itemsize: int) -> int:
    """Native sublane packing: 8 for 4-byte, 16 for 2-byte, 32 for 1-byte."""
    return max(8, (4 // max(1, itemsize)) * 8)


def _row_tile(rows: int, cols: int, itemsize: int) -> int:
    """Row tile: packing-aligned, ~_TARGET_TILE_BYTES/buffer, >=2 grid tiles."""
    pack = _sublane_pack(itemsize)
    if rows <= pack:
        return rows  # block rows == full rows (legal under the (8,128) rule)
    target_rows = max(pack, _TARGET_TILE_BYTES // (cols * itemsize))
    tile_r = (min(rows, target_rows) // pack) * pack
    # Keep at least 2 tiles on the "parallel" axis so both v7x TCs run.
    half = max(pack, ((rows // 2) // pack) * pack)
    tile_r = min(tile_r, half)
    return max(pack, tile_r)


def _pallas_copy_2d(x2d: jax.Array, tile_r: int) -> jax.Array:
    """Tiled, pipelined, lane-dense Pallas identity copy (fresh output)."""
    rows, cols = x2d.shape
    itemsize = jnp.dtype(x2d.dtype).itemsize
    return pl.pallas_call(
        _copy_kernel,
        out_shape=jax.ShapeDtypeStruct((rows, cols), x2d.dtype),
        grid=(pl.cdiv(rows, tile_r),),
        in_specs=[pl.BlockSpec((tile_r, cols), lambda i: (i, 0))],
        out_specs=pl.BlockSpec((tile_r, cols), lambda i: (i, 0)),
        compiler_params=pltpu.CompilerParams(
            dimension_semantics=("parallel",),
            vmem_limit_bytes=_VMEM_LIMIT_BYTES,
        ),
        cost_estimate=pl.CostEstimate(
            flops=0,
            transcendentals=0,
            bytes_accessed=2 * rows * cols * itemsize,
        ),
    )(x2d)


@functools.partial(jax.jit, static_argnums=(1, 2, 3))
def _identity_impl(x: jax.Array, rows: int, cols: int, tile_r: int) -> jax.Array:
    total = x.size
    flat = x.reshape(-1)
    padded = rows * cols
    if padded != total:
        # Rare fallback (element count not a multiple of 128): pad so the
        # kernel still sees a lane-dense, pipelineable layout.
        flat = jnp.pad(flat, (0, padded - total))
    y2d = _pallas_copy_2d(flat.reshape(rows, cols), tile_r)
    y = y2d.reshape(-1)
    if padded != total:
        y = y[:total]
    return y.reshape(x.shape)


def pallas_identity(x: jax.Array) -> jax.Array:
    """Identity over x via the Pallas TPU kernel (no donation, x stays valid)."""
    x = jnp.asarray(x)
    if x.size == 0:
        return x
    rows, cols = _lane_dense_shape(x.size)
    tile_r = _row_tile(rows, cols, jnp.dtype(x.dtype).itemsize)
    return _identity_impl(x, rows, cols, tile_r)


class QAggregator:
    """JAX/Pallas port of the (empty) PyTorch QAggregator module."""

    def __init__(self):
        # Reference __init__ is `pass`: no parameters to initialize.
        pass

    def forward(self, x: jax.Array | None = None):
        # Reference forward is `pass` -> returns None.  When an input is
        # provided we push it once through the optimized Pallas identity
        # kernel to exercise the TPU path; the result is discarded and no
        # state is stored, matching the reference's no-op semantics.
        if x is not None:
            pallas_identity(x)
        return None


if __name__ == "__main__":
    key = jax.random.PRNGKey(0)
    # Small synthetic NCHW input (the empty forward implies no particular
    # shape; we pick batch=2, channels=4, spatial=16x16).
    x = jax.random.normal(key, (2, 4, 16, 16), dtype=jnp.float32)

    agg = QAggregator()
    out = agg.forward(x)          # returns None, like the reference module
    assert out is None

    # Direct kernel check: the Pallas identity copy preserves the input.
    y = pallas_identity(x)
    jax.block_until_ready(y)
    assert y.shape == x.shape and y.dtype == x.dtype
    assert bool(jnp.all(y == x))

    print("KERNEL_OK")
</pallas_src>

<mosaic_0001>
module attributes {stable_mosaic.version = 11 : i64} {
  func.func @_copy_kernel(%arg0: i32, %arg1: memref<1x2048xf32, #tpu.memory_space<vmem>>, %arg2: memref<1x2048xf32, #tpu.memory_space<vmem>>) attributes {dimension_semantics = [#tpu.dimension_semantics<parallel>], iteration_bounds = array<i64: 1>, scalar_prefetch = 0 : i64, scratch_operands = 0 : i64, tpu.core_type = #tpu.core_type<tc>, window_params = [{transform_indices = @transform_0, window_bounds = array<i64: 1, 2048>}, {transform_indices = @transform_1, window_bounds = array<i64: 1, 2048>}]} {
    %c0 = arith.constant 0 : index
    %c0_0 = arith.constant 0 : index
    %0 = vector.load %arg1[%c0, %c0_0] : memref<1x2048xf32, #tpu.memory_space<vmem>>, vector<1x2048xf32>
    %c0_1 = arith.constant 0 : index
    %c0_2 = arith.constant 0 : index
    %1 = vector.load %arg2[%c0_1, %c0_2] : memref<1x2048xf32, #tpu.memory_space<vmem>>, vector<1x2048xf32>
    tpu.vector_store %arg2[%c0_1, %c0_2], %0 {strides = array<i32>} : memref<1x2048xf32, #tpu.memory_space<vmem>>, vector<1x2048xf32>,
    return
  }
  func.func @transform_0(%arg0: i32) -> (i32, i32) {
    %c0_i32 = arith.constant 0 : i32
    %c0_i32_0 = arith.constant 0 : i32
    return %arg0, %c0_i32 : i32, i32
  }
  func.func @transform_1(%arg0: i32) -> (i32, i32) {
    %c0_i32 = arith.constant 0 : i32
    %c0_i32_0 = arith.constant 0 : i32
    return %arg0, %c0_i32 : i32, i32
  }
}

</mosaic_0001>

<llo_original>
// kernel: _identity_impl.1
$region0: #{_identity_impl.1}
  #allocation0 [shape = 'u32[]', space=smem, size = 0x4, offset = 0x4, fixed_abs, tag = 'smem constant byte address 0x4 - core index']
  #allocation1 [shape = 'u32[144,128]{1,0:T(1,128)}', space=vmem, size = 0x12000, scoped, tag = 'internal scratch']
  %s0 = inlined_call_operand.vmem [shape: f32[1,2048], index: 0, kind: input, shape index: {}]
  %s1 = inlined_call_operand.vmem [shape: f32[1,2048], index: 1, kind: output, shape index: {}]
  %s2 = sld [smem:[#allocation0]]
  $region14: #{_identity_impl.1} parent=0
    _
  %s4 = ssub.s32 1, %s2
  %s5 = scalar_select 0, %s4, %s2
  // Predicated region
  $region2: #{_identity_impl.1} parent=0 // pred_check
    _
  $region3: #{_identity_impl.1} parent=0 // pred_check_branch
    %7 = sbr.rel (0) target = $region5
  $region4: #{_identity_impl.1} parent=0 // pred_region
    _
  $region5: #{_identity_impl.1} parent=0 // pred_fallthru
    _
  %v8 = vld [vmem:[%s0] sm:$0xff]
  %v9 = vld [vmem:[%s0 + $0x8] sm:$0xff]
  %10 = vst [vmem:[%s1] sm:$0xff] %v8
  %11 = vst [vmem:[%s1 + $0x8] sm:$0xff] %v9
  // Predicated region
  $region6: #{_identity_impl.1} parent=0 // pred_check
    _
  $region7: #{_identity_impl.1} parent=0 // pred_check_branch
    %13 = sbr.rel (0) target = $region9
  $region8: #{_identity_impl.1} parent=0 // pred_region
    _
  $region9: #{_identity_impl.1} parent=0 // pred_fallthru
    _
  // Predicated region
  $region10: #{_identity_impl.1} parent=0 // pred_check
    _
  $region11: #{_identity_impl.1} parent=0 // pred_check_branch
    %15 = sbr.rel (0) target = $region13
  $region12: #{_identity_impl.1} parent=0 // pred_region
    _
  $region13: #{_identity_impl.1} parent=0 // pred_fallthru
    _

</llo_original>
